<compile_context>
chip_gen: v6e
topology: v6e:2x2x1
jax: 0.10.0
libtpu: 0.0.40
codegen_flags: <defaults>
</compile_context>

<pallas_src>
import random

import jax
import jax.numpy as jnp
import numpy as np
from jax.experimental import pallas as pl
from jax.experimental.pallas import tpu as pltpu

LANE = 128  # TPU lane width; every padded dim is a multiple of this.


def _round_up(x, d):
    return (x + d - 1) // d * d


# --------------------------------------------------------------------------- #
# Kernels
# --------------------------------------------------------------------------- #
def _fullk_kernel(w_ref, x_ref, b_ref, o_ref):
    """Small-n fast path: one (tm, tn) output tile per grid step, full K in-block.

    w_ref : (tm, Kp) bf16   x_ref : (Kp, tn) bf16
    b_ref : (1, tn)  f32    o_ref : (tm, tn) f32
    """
    o_ref[...] = (
        jnp.dot(w_ref[...], x_ref[...], preferred_element_type=jnp.float32)
        + b_ref[...]
    )


def _tiledk_kernel(w_ref, x_ref, b_ref, o_ref):
    """General path: (tm, tn) output tile accumulated directly into o_ref over K.

    The output block index (i, j) is constant across the K grid axis, so the f32
    output tile stays resident in VMEM — no separate accumulator scratch.  Bias
    is folded into the k == 0 initialisation, so it is added exactly once.
    """
    k = pl.program_id(2)

    @pl.when(k == 0)
    def _init():
        o_ref[...] = jnp.broadcast_to(b_ref[...], o_ref.shape)

    o_ref[...] += jnp.dot(
        w_ref[...], x_ref[...], preferred_element_type=jnp.float32
    )


# --------------------------------------------------------------------------- #
# Wrapper / factory
# --------------------------------------------------------------------------- #
def make_sparse_rnn_step(
    weight,
    bias,
    *,
    tm=256,
    tn=512,
    tk=512,
    compute_dtype=jnp.bfloat16,
    full_k_max=1024,
    vmem_limit_bytes=32 * 1024 * 1024,
):
    """Precompute padded / bf16-cast W and bias once (they are step-invariant for
    an RNN) and return a jitted step(inp) computing weight @ inp + bias."""
    n, k_dim = weight.shape
    assert n == k_dim, "weight must be square (n, n)"
    assert bias.shape == (n,)

    # torch's (n, m) + (n,) trailing-axis broadcast requires m == n, so the
    # output / N-axis extents are already known here.
    tm_eff = min(tm, _round_up(n, LANE))
    tn_eff = min(tn, _round_up(n, LANE))
    Mp = _round_up(n, tm_eff)
    Np = _round_up(n, tn_eff)

    use_full_k = _round_up(n, LANE) <= full_k_max
    if use_full_k:
        tk_eff = Kp = _round_up(n, LANE)  # single K block per output tile
    else:
        tk_eff = min(tk, _round_up(n, LANE))
        Kp = _round_up(n, tk_eff)

    # Step-invariant padded operands (zero padding contributes 0 to the matmul).
    w_pad = (
        jnp.zeros((Mp, Kp), compute_dtype)
        .at[:n, :n]
        .set(weight.astype(compute_dtype))
    )
    b_pad = jnp.zeros((1, Np), jnp.float32).at[0, :n].set(bias.astype(jnp.float32))

    mb, nb = Mp // tm_eff, Np // tn_eff

    if use_full_k:
        grid_spec = pltpu.PrefetchScalarGridSpec(
            num_scalar_prefetch=0,
            grid=(mb, nb),
            in_specs=[
                pl.BlockSpec((tm_eff, Kp), lambda i, j: (i, 0)),  # W row-panel
                pl.BlockSpec((Kp, tn_eff), lambda i, j: (0, j)),  # x col-panel
                pl.BlockSpec((1, tn_eff), lambda i, j: (0, j)),   # bias
            ],
            out_specs=pl.BlockSpec((tm_eff, tn_eff), lambda i, j: (i, j)),
        )
        kernel = _fullk_kernel
        dim_sem = ("parallel", "parallel")
    else:
        kb = Kp // tk_eff
        grid_spec = pltpu.PrefetchScalarGridSpec(
            num_scalar_prefetch=0,
            grid=(mb, nb, kb),
            in_specs=[
                pl.BlockSpec((tm_eff, tk_eff), lambda i, j, k: (i, k)),  # W
                pl.BlockSpec((tk_eff, tn_eff), lambda i, j, k: (k, j)),  # x
                pl.BlockSpec((1, tn_eff), lambda i, j, k: (0, j)),       # bias
            ],
            out_specs=pl.BlockSpec((tm_eff, tn_eff), lambda i, j, k: (i, j)),
        )
        kernel = _tiledk_kernel
        dim_sem = ("parallel", "parallel", "arbitrary")

    call = pl.pallas_call(
        kernel,
        out_shape=jax.ShapeDtypeStruct((Mp, Np), jnp.float32),
        grid_spec=grid_spec,
        compiler_params=pltpu.CompilerParams(
            # M / N output tiles are independent (megacore-sharded on v7x); the
            # K axis (if present) is the serial reduction carrying the resident
            # output tile.
            dimension_semantics=dim_sem,
            # v5e's default scoped VMEM is 16 MiB; raise explicitly so the
            # larger tiles (and their double-buffering) land on all generations.
            vmem_limit_bytes=vmem_limit_bytes,
        ),
    )

    def _step_impl(w_pad_, b_pad_, inp):
        k2, m = inp.shape
        if k2 != n or m != n:
            raise ValueError(
                "torch's trailing-axis bias broadcast needs inp of shape (n, n)"
            )
        x_pad = (
            jnp.zeros((Kp, Np), compute_dtype)
            .at[:n, :m]
            .set(inp.astype(compute_dtype))
        )
        out_pad = call(w_pad_, x_pad, b_pad_)
        return out_pad[:n, :m]

    _step = jax.jit(_step_impl)

    def step(inp):
        return _step(w_pad, b_pad, inp)

    return step


# --------------------------------------------------------------------------- #
# Deterministic sparse-weight construction (mirrors the torch module's graph)
# --------------------------------------------------------------------------- #
def build_sparse_weight(n, key, degree_sampling):
    """Dense materialization of the sparse COO weight: self-loops plus symmetric
    randomly sampled edges, values ~ U[0, 1). Deterministic."""
    rng = random.Random(0)
    edge_indices = set()
    for i in range(n):
        k = min(max(int(degree_sampling(rng)), 0), n - 1)
        edge_indices.add((i, i))
        js = {i}
        while len(js) < k:
            j = rng.randint(0, n - 1)
            if j not in js:
                js.add(j)
                edge_indices.add((i, j))
                edge_indices.add((j, i))
    edge_indices = sorted(edge_indices)  # deterministic ordering
    values = np.asarray(
        jax.random.uniform(key, (len(edge_indices),), dtype=jnp.float32)
    )

    w = np.zeros((n, n), dtype=np.float32)
    for idx, (i, j) in enumerate(edge_indices):
        w[i, j] = values[idx]
    return jnp.asarray(w)


# --------------------------------------------------------------------------- #
# Test driver
# --------------------------------------------------------------------------- #
def _run_case(n, key, *, nonzero_bias, **step_kwargs):
    k_w, k_x, k_b = jax.random.split(key, 3)
    degree_sampling = lambda rng: rng.gauss(4.0, 2.0)  # normal(mean=4, std=2)

    weight = build_sparse_weight(n, k_w, degree_sampling)
    bias = (
        jax.random.normal(k_b, (n,), dtype=jnp.float32)
        if nonzero_bias
        else jnp.zeros((n,), dtype=jnp.float32)
    )
    inp = jax.random.normal(k_x, (n, n), dtype=jnp.float32)

    step = make_sparse_rnn_step(weight, bias, **step_kwargs)
    out = jax.block_until_ready(step(inp))

    # Tight check against a reference using the same bf16-quantized W/x streams
    # (validates tiling, accumulation and the per-column bias broadcast exactly;
    # the quantization itself is the explicitly chosen optimization).
    w_q = weight.astype(jnp.bfloat16).astype(jnp.float32)
    x_q = inp.astype(jnp.bfloat16).astype(jnp.float32)
    ref_q = w_q @ x_q + bias
    np.testing.assert_allclose(np.asarray(out), np.asarray(ref_q), rtol=1e-3, atol=1e-3)

    # Loose sanity check against the exact f32 math of the torch module
    # (bf16 input rounding bounds the error; row nnz is only ~2*degree).
    ref = weight @ inp + bias
    np.testing.assert_allclose(np.asarray(out), np.asarray(ref), rtol=5e-2, atol=1.5e-1)


if __name__ == "__main__":
    key = jax.random.PRNGKey(0)
    k0, k1, k2 = jax.random.split(key, 3)

    # Original tiny size (n = 32), zero bias like the module: single lane-dense
    # 128x128 block on the full-K fast path.
    _run_case(32, k0, nonzero_bias=False)

    # n = 256 with a NONZERO bias: validates the per-column (trailing-axis) bias
    # broadcast; still the full-K fast path (one 256x256 output tile).
    _run_case(256, k1, nonzero_bias=True)

    # n = 512 with tiles forced down to 256 and the fast path disabled: exercises
    # the 3-axis grid (2x2x2), direct accumulation into the resident o_ref tile,
    # bias-at-k==0 init, and megacore-parallel M/N tiles.
    _run_case(512, k2, nonzero_bias=True, tm=256, tn=256, tk=256, full_k_max=128)

    print("KERNEL_OK")
</pallas_src>

<mosaic_0001>
module attributes {stable_mosaic.version = 11 : i64} {
  func.func @_fullk_kernel(%arg0: i32, %arg1: i32, %arg2: memref<128x128xbf16, #tpu.memory_space<vmem>>, %arg3: memref<128x128xbf16, #tpu.memory_space<vmem>>, %arg4: memref<1x128xf32, #tpu.memory_space<vmem>>, %arg5: memref<128x128xf32, #tpu.memory_space<vmem>>) attributes {dimension_semantics = [#tpu.dimension_semantics<parallel>, #tpu.dimension_semantics<parallel>], iteration_bounds = array<i64: 1, 1>, scalar_prefetch = 0 : i64, scratch_operands = 0 : i64, tpu.core_type = #tpu.core_type<tc>, window_params = [{transform_indices = @transform_0, window_bounds = array<i64: 128, 128>}, {transform_indices = @transform_1, window_bounds = array<i64: 128, 128>}, {transform_indices = @transform_2, window_bounds = array<i64: 1, 128>}, {transform_indices = @transform_3, window_bounds = array<i64: 128, 128>}]} {
    %c0 = arith.constant 0 : index
    %c0_0 = arith.constant 0 : index
    %0 = vector.load %arg2[%c0, %c0_0] : memref<128x128xbf16, #tpu.memory_space<vmem>>, vector<128x128xbf16>
    %c0_1 = arith.constant 0 : index
    %c0_2 = arith.constant 0 : index
    %1 = vector.load %arg3[%c0_1, %c0_2] : memref<128x128xbf16, #tpu.memory_space<vmem>>, vector<128x128xbf16>
    %cst = arith.constant dense<0.000000e+00> : vector<128x128xf32>
    %2 = tpu.matmul %0, %1, %cst {dimension_numbers = #tpu.dot_dimension_numbers<[1], [0], [0], [1], [0, 0, 1, 1], [], []>} : vector<128x128xbf16>, vector<128x128xbf16>, vector<128x128xf32> -> vector<128x128xf32>
    %c0_3 = arith.constant 0 : index
    %c0_4 = arith.constant 0 : index
    %3 = vector.load %arg4[%c0_3, %c0_4] : memref<1x128xf32, #tpu.memory_space<vmem>>, vector<1x128xf32>
    %4 = vector.broadcast %3 : vector<1x128xf32> to vector<128x128xf32>
    %5 = arith.addf %2, %4 : vector<128x128xf32>
    %c0_5 = arith.constant 0 : index
    %c0_6 = arith.constant 0 : index
    %6 = vector.load %arg5[%c0_5, %c0_6] : memref<128x128xf32, #tpu.memory_space<vmem>>, vector<128x128xf32>
    tpu.vector_store %arg5[%c0_5, %c0_6], %5 {strides = array<i32>} : memref<128x128xf32, #tpu.memory_space<vmem>>, vector<128x128xf32>,
    return
  }
  func.func @transform_0(%arg0: i32, %arg1: i32) -> (i32, i32) {
    %c0_i32 = arith.constant 0 : i32
    %c0_i32_0 = arith.constant 0 : i32
    return %arg0, %c0_i32 : i32, i32
  }
  func.func @transform_1(%arg0: i32, %arg1: i32) -> (i32, i32) {
    %c0_i32 = arith.constant 0 : i32
    %c0_i32_0 = arith.constant 0 : i32
    return %c0_i32, %arg1 : i32, i32
  }
  func.func @transform_2(%arg0: i32, %arg1: i32) -> (i32, i32) {
    %c0_i32 = arith.constant 0 : i32
    %c0_i32_0 = arith.constant 0 : i32
    return %c0_i32, %arg1 : i32, i32
  }
  func.func @transform_3(%arg0: i32, %arg1: i32) -> (i32, i32) {
    %c0_i32 = arith.constant 0 : i32
    return %arg0, %arg1 : i32, i32
  }
}

</mosaic_0001>

<llo_original>
// kernel: _step_impl.1
$region0: #{_step_impl.1}
  #allocation0 [shape = 'u32[]', space=smem, size = 0x4, offset = 0x4, fixed_abs, tag = 'smem constant byte address 0x4 - core index']
  #allocation1 [shape = 'u32[144,128]{1,0:T(1,128)}', space=vmem, size = 0x12000, scoped, tag = 'internal scratch']
  %s0 = inlined_call_operand.vmem [shape: bf16[128,128], index: 0, kind: input, shape index: {}]
  %s1 = inlined_call_operand.vmem [shape: bf16[128,128], index: 1, kind: input, shape index: {}]
  %s2 = inlined_call_operand.vmem [shape: f32[1,128], index: 2, kind: input, shape index: {}]
  %s3 = inlined_call_operand.vmem [shape: f32[128,128], index: 3, kind: output, shape index: {}]
  %s4 = sld [smem:[#allocation0]]
  $region22: #{_step_impl.1} parent=0
    _
  %s6 = ssub.s32 1, %s4
  %s7 = scalar_select 0, %s6, %s4
  // Predicated region
  $region2: #{_step_impl.1} parent=0 // pred_check
    _
  $region3: #{_step_impl.1} parent=0 // pred_check_branch
    %9 = sbr.rel (0) target = $region5
  $region4: #{_step_impl.1} parent=0 // pred_region
    _
  $region5: #{_step_impl.1} parent=0 // pred_fallthru
    _
  // Predicated region
  $region6: #{_step_impl.1} parent=0 // pred_check
    _
  $region7: #{_step_impl.1} parent=0 // pred_check_branch
    %11 = sbr.rel (0) target = $region9
  $region8: #{_step_impl.1} parent=0 // pred_region
    _
  $region9: #{_step_impl.1} parent=0 // pred_fallthru
    _
  // Predicated region
  $region10: #{_step_impl.1} parent=0 // pred_check
    _
  $region11: #{_step_impl.1} parent=0 // pred_check_branch
    %13 = sbr.rel (0) target = $region13
  $region12: #{_step_impl.1} parent=0 // pred_region
    _
  $region13: #{_step_impl.1} parent=0 // pred_fallthru
    _
  %v15 = vld [vmem:[%s0] sm:$0xf]
  %v16 = vld [vmem:[%s0 + $0x4] sm:$0xf]
  %v17 = vld [vmem:[%s0 + $0x8] sm:$0xf]
  %v18 = vld [vmem:[%s0 + $0xc] sm:$0xf]
  %v19 = vld [vmem:[%s0 + $0x10] sm:$0xf]
  %v20 = vld [vmem:[%s0 + $0x14] sm:$0xf]
  %v21 = vld [vmem:[%s0 + $0x18] sm:$0xf]
  %v22 = vld [vmem:[%s0 + $0x1c] sm:$0xf]
  %v23 = vld [vmem:[%s0 + $0x20] sm:$0xf]
  %v24 = vld [vmem:[%s0 + $0x24] sm:$0xf]
  %v25 = vld [vmem:[%s0 + $0x28] sm:$0xf]
  %v26 = vld [vmem:[%s0 + $0x2c] sm:$0xf]
  %v27 = vld [vmem:[%s0 + $0x30] sm:$0xf]
  %v28 = vld [vmem:[%s0 + $0x34] sm:$0xf]
  %v29 = vld [vmem:[%s0 + $0x38] sm:$0xf]
  %v30 = vld [vmem:[%s0 + $0x3c] sm:$0xf]
  %v31 = vld [vmem:[%s1] sm:$0xf]
  %v32 = vld [vmem:[%s1 + $0x4] sm:$0xf]
  %v33 = vld [vmem:[%s1 + $0x8] sm:$0xf]
  %v34 = vld [vmem:[%s1 + $0xc] sm:$0xf]
  %v35 = vld [vmem:[%s1 + $0x10] sm:$0xf]
  %v36 = vld [vmem:[%s1 + $0x14] sm:$0xf]
  %v37 = vld [vmem:[%s1 + $0x18] sm:$0xf]
  %v38 = vld [vmem:[%s1 + $0x1c] sm:$0xf]
  %v39 = vld [vmem:[%s1 + $0x20] sm:$0xf]
  %v40 = vld [vmem:[%s1 + $0x24] sm:$0xf]
  %v41 = vld [vmem:[%s1 + $0x28] sm:$0xf]
  %v42 = vld [vmem:[%s1 + $0x2c] sm:$0xf]
  %v43 = vld [vmem:[%s1 + $0x30] sm:$0xf]
  %v44 = vld [vmem:[%s1 + $0x34] sm:$0xf]
  %v45 = vld [vmem:[%s1 + $0x38] sm:$0xf]
  %v46 = vld [vmem:[%s1 + $0x3c] sm:$0xf]
  %v47 = vld [vmem:[%s2] sm:$0x1]
  %v49 = vlaneseq
  %v50 = vshrl.u32 %v49, 7
  %v51 = vsub.s32 0, %v50
  %v52 = vrot.slane %v47, %v51
  %v70 = vunpack.c.l.b16 %v15
  %v71 = vunpack.c.l.b16 %v16
  %v72 = vunpack.c.l.b16 %v17
  %v73 = vunpack.c.l.b16 %v18
  %v74 = vunpack.c.l.b16 %v19
  %v75 = vunpack.c.l.b16 %v20
  %v76 = vunpack.c.l.b16 %v21
  %v77 = vunpack.c.l.b16 %v22
  %v78 = vunpack.c.l.b16 %v23
  %v79 = vunpack.c.l.b16 %v24
  %v80 = vunpack.c.l.b16 %v25
  %v81 = vunpack.c.l.b16 %v26
  %v82 = vunpack.c.l.b16 %v27
  %v83 = vunpack.c.l.b16 %v28
  %v84 = vunpack.c.l.b16 %v29
  %v85 = vunpack.c.l.b16 %v30
  %v86 = vpack.c.b16 %v71, %v70
  %v87 = vpack.c.b16 %v73, %v72
  %v88 = vpack.c.b16 %v75, %v74
  %v89 = vpack.c.b16 %v77, %v76
  %v90 = vpack.c.b16 %v79, %v78
  %v91 = vpack.c.b16 %v81, %v80
  %v92 = vpack.c.b16 %v83, %v82
  %v93 = vpack.c.b16 %v85, %v84
  %v118 = vunpack.c.l.b16 %v31
  %v119 = vunpack.c.l.b16 %v32
  %v120 = vunpack.c.l.b16 %v33
  %v121 = vunpack.c.l.b16 %v34
  %v122 = vunpack.c.l.b16 %v35
  %v123 = vunpack.c.l.b16 %v36
  %v124 = vunpack.c.l.b16 %v37
  %v125 = vunpack.c.l.b16 %v38
  %v126 = vunpack.c.l.b16 %v39
  %v127 = vunpack.c.l.b16 %v40
  %v128 = vunpack.c.l.b16 %v41
  %v129 = vunpack.c.l.b16 %v42
  %v130 = vunpack.c.l.b16 %v43
  %v131 = vunpack.c.l.b16 %v44
  %v132 = vunpack.c.l.b16 %v45
  %v133 = vunpack.c.l.b16 %v46
  %v134 = vpack.c.b16 %v119, %v118
  %v135 = vpack.c.b16 %v121, %v120
  %v136 = vpack.c.b16 %v123, %v122
  %v137 = vpack.c.b16 %v125, %v124
  %v138 = vpack.c.b16 %v127, %v126
  %v139 = vpack.c.b16 %v129, %v128
  %v140 = vpack.c.b16 %v131, %v130
  %v141 = vpack.c.b16 %v133, %v132
  %150 = vmatprep.subr.bf16.mxu0 0
  %151 = vmatpush1.bf16.msra.mxu0 %v141
  %152 = vmatprep.subr.bf16.mxu0 0
  %153 = vmatpush1.bf16.msra.mxu0 %v140
  %154 = vmatprep.subr.bf16.mxu0 0
  %155 = vmatpush1.bf16.msra.mxu0 %v139
  %156 = vmatprep.subr.bf16.mxu0 0
  %157 = vmatpush1.bf16.msra.mxu0 %v138
  %158 = vmatprep.subr.bf16.mxu0 0
  %159 = vmatpush1.bf16.msra.mxu0 %v137
  %160 = vmatprep.subr.bf16.mxu0 0
  %161 = vmatpush1.bf16.msra.mxu0 %v136
  %162 = vmatprep.subr.bf16.mxu0 0
  %163 = vmatpush1.bf16.msra.mxu0 %v135
  %164 = vmatprep.subr.bf16.mxu0 0
  %165 = vmatpush1.bf16.msra.mxu0 %v134
  %166 = vmatprep.subr.bf16.mxu0 0
  %167 = vmatpush2.bf16.msra.mxu0 0
  %168 = vmatprep.subr.bf16.mxu0 0
  %169 = vmatpush2.bf16.msra.mxu0 0
  %170 = vmatprep.subr.bf16.mxu0 0
  %171 = vmatpush2.bf16.msra.mxu0 0
  %172 = vmatprep.subr.bf16.mxu0 0
  %173 = vmatpush2.bf16.msra.mxu0 0
  %174 = vmatprep.subr.bf16.mxu0 0
  %175 = vmatpush2.bf16.msra.mxu0 0
  %176 = vmatprep.subr.bf16.mxu0 0
  %177 = vmatpush2.bf16.msra.mxu0 0
  %178 = vmatprep.subr.bf16.mxu0 0
  %179 = vmatpush2.bf16.msra.mxu0 0
  %180 = vmatprep.subr.bf16.mxu0 0
  %181 = vmatpush2.bf16.msra.mxu0 0
  %182 = vmatprep.mubr.bf16.mxu0 0
  %183 = vmatmul.mubr.bf16.gmra.mxu0 %v86
  %v184 = vpop.f32.mrf.mxu0
  %v185 = vadd.f32 %v52, %v184
  %v186 = vpop.f32.mrf.mxu0
  %v187 = vpop.f32.mrf.mxu0
  %v188 = vadd.f32 %v52, %v187
  %v189 = vpop.f32.mrf.mxu0
  %190 = vmatprep.mubr.bf16.mxu0 0
  %191 = vmatmul.mubr.bf16.gmra.mxu0 %v87
  %v192 = vpop.f32.mrf.mxu0
  %v193 = vadd.f32 %v52, %v192
  %v194 = vpop.f32.mrf.mxu0
  %v195 = vpop.f32.mrf.mxu0
  %v196 = vadd.f32 %v52, %v195
  %v197 = vpop.f32.mrf.mxu0
  %198 = vmatprep.mubr.bf16.mxu0 0
  %199 = vmatmul.mubr.bf16.gmra.mxu0 %v88
  %v200 = vpop.f32.mrf.mxu0
  %v201 = vadd.f32 %v52, %v200
  %v202 = vpop.f32.mrf.mxu0
  %v203 = vpop.f32.mrf.mxu0
  %v204 = vadd.f32 %v52, %v203
  %v205 = vpop.f32.mrf.mxu0
  %206 = vmatprep.mubr.bf16.mxu0 0
  %207 = vmatmul.mubr.bf16.gmra.mxu0 %v89
  %v208 = vpop.f32.mrf.mxu0
  %v209 = vadd.f32 %v52, %v208
  %v210 = vpop.f32.mrf.mxu0
  %v211 = vpop.f32.mrf.mxu0
  %v212 = vadd.f32 %v52, %v211
  %v213 = vpop.f32.mrf.mxu0
  %214 = vmatprep.mubr.bf16.mxu0 0
  %215 = vmatmul.mubr.bf16.gmra.mxu0 %v90
  %v216 = vpop.f32.mrf.mxu0
  %v217 = vadd.f32 %v52, %v216
  %v218 = vpop.f32.mrf.mxu0
  %v219 = vpop.f32.mrf.mxu0
  %v220 = vadd.f32 %v52, %v219
  %v221 = vpop.f32.mrf.mxu0
  %222 = vmatprep.mubr.bf16.mxu0 0
  %223 = vmatmul.mubr.bf16.gmra.mxu0 %v91
  %v224 = vpop.f32.mrf.mxu0
  %v225 = vadd.f32 %v52, %v224
  %v226 = vpop.f32.mrf.mxu0
  %v227 = vpop.f32.mrf.mxu0
  %v228 = vadd.f32 %v52, %v227
  %v229 = vpop.f32.mrf.mxu0
  %230 = vmatprep.mubr.bf16.mxu0 0
  %231 = vmatmul.mubr.bf16.gmra.mxu0 %v92
  %v232 = vpop.f32.mrf.mxu0
  %v233 = vadd.f32 %v52, %v232
  %v234 = vpop.f32.mrf.mxu0
  %v235 = vpop.f32.mrf.mxu0
  %v236 = vadd.f32 %v52, %v235
  %v237 = vpop.f32.mrf.mxu0
  %238 = vmatprep.mubr.bf16.mxu0 0
  %239 = vmatmul.mubr.bf16.gmra.mxu0 %v93
  %v240 = vpop.f32.mrf.mxu0
  %v241 = vadd.f32 %v52, %v240
  %v242 = vpop.f32.mrf.mxu0
  %v243 = vpop.f32.mrf.mxu0
  %v244 = vadd.f32 %v52, %v243
  %v245 = vpop.f32.mrf.mxu0
  %246 = vdwg.mxu0
  %247 = vst [vmem:[%s3] sm:$0xff] %v185
  %248 = vst [vmem:[%s3 + $0x8] sm:$0xff] %v188
  %249 = vst [vmem:[%s3 + $0x10] sm:$0xff] %v193
  %250 = vst [vmem:[%s3 + $0x18] sm:$0xff] %v196
  %251 = vst [vmem:[%s3 + $0x20] sm:$0xff] %v201
  %252 = vst [vmem:[%s3 + $0x28] sm:$0xff] %v204
  %253 = vst [vmem:[%s3 + $0x30] sm:$0xff] %v209
  %254 = vst [vmem:[%s3 + $0x38] sm:$0xff] %v212
  %255 = vst [vmem:[%s3 + $0x40] sm:$0xff] %v217
  %256 = vst [vmem:[%s3 + $0x48] sm:$0xff] %v220
  %257 = vst [vmem:[%s3 + $0x50] sm:$0xff] %v225
  %258 = vst [vmem:[%s3 + $0x58] sm:$0xff] %v228
  %259 = vst [vmem:[%s3 + $0x60] sm:$0xff] %v233
  %260 = vst [vmem:[%s3 + $0x68] sm:$0xff] %v236
  %261 = vst [vmem:[%s3 + $0x70] sm:$0xff] %v241
  %262 = vst [vmem:[%s3 + $0x78] sm:$0xff] %v244
  // Predicated region
  $region14: #{_step_impl.1} parent=0 // pred_check
    _
  $region15: #{_step_impl.1} parent=0 // pred_check_branch
    %264 = sbr.rel (0) target = $region17
  $region16: #{_step_impl.1} parent=0 // pred_region
    _
  $region17: #{_step_impl.1} parent=0 // pred_fallthru
    _
  // Predicated region
  $region18: #{_step_impl.1} parent=0 // pred_check
    _
  $region19: #{_step_impl.1} parent=0 // pred_check_branch
    %266 = sbr.rel (0) target = $region21
  $region20: #{_step_impl.1} parent=0 // pred_region
    _
  $region21: #{_step_impl.1} parent=0 // pred_fallthru
    _

</llo_original>
